<compile_context>
chip_gen: v7x
topology: tpu7x:2x2x1
jax: 0.10.0
libtpu: 0.0.40
codegen_flags: <defaults>
</compile_context>

<pallas_src>
import functools

import jax
import jax.numpy as jnp
from jax.experimental import pallas as pl
from jax.experimental.pallas import tpu as pltpu


# --------------------------------------------------------------------------
# Kernels
# --------------------------------------------------------------------------
def _split_kernel(x_ref, wt_ref, b_ref, o_ref):
    # x_ref:  (tm, half) -- the n-th embedding half of a time tile; the half
    #                       offset was absorbed by the BlockSpec / DMA.
    # wt_ref: (half, E)  -- pre-transposed Linear weight (in, out), resident.
    # b_ref:  (1, E)
    # o_ref:  (tm, E)    -- rows [t0, t0+tm) of the n-th output slab.
    y = jnp.dot(x_ref[...], wt_ref[...], preferred_element_type=jnp.float32)
    o_ref[...] = (y + b_ref[...]).astype(o_ref.dtype)


def _fused_kernel(x_ref, wt_ref, b_ref, o_ref):
    # Fallback for half % 128 != 0: load the full (tm, E) tile and split it
    # in-register (two MXU passes against the same resident weight).
    # x_ref:  (tm, E)
    # wt_ref: (half, E)
    # b_ref:  (1, E)
    # o_ref:  (2, tm, E)
    half = wt_ref.shape[0]
    x = x_ref[...]
    wt = wt_ref[...]
    b = b_ref[...]
    y0 = jnp.dot(x[:, :half], wt, preferred_element_type=jnp.float32)
    o_ref[0] = (y0 + b).astype(o_ref.dtype)   # store immediately so only one
    y1 = jnp.dot(x[:, half:], wt, preferred_element_type=jnp.float32)
    o_ref[1] = (y1 + b).astype(o_ref.dtype)   # f32 result is live at a time.


# --------------------------------------------------------------------------
# Wrapper helpers
# --------------------------------------------------------------------------
def _vmem_limit_bytes():
    """Physical VMEM with ~25% headroom; None if the query is unavailable."""
    try:
        cap = int(pltpu.get_tpu_info().vmem_capacity_bytes)
        return max(32 * 1024 * 1024, (cap * 3) // 4)
    except Exception:
        return None


def _sublane_pack(dtype):
    return {4: 8, 2: 16, 1: 32}.get(jnp.dtype(dtype).itemsize, 8)


def _param_spec(block_shape, index_map, single_buffer):
    # Grid-resident operand (constant index map): never refetched, so a second
    # pipeline buffer is wasted VMEM -- request depth 1 when supported.
    if single_buffer:
        return pl.BlockSpec(block_shape, index_map, pipeline_mode=pl.Buffered(1))
    return pl.BlockSpec(block_shape, index_map)


@functools.partial(jax.jit, static_argnames=("block_m", "single_buffer_params"))
def _upsample_impl(x, weight, bias, *, block_m, single_buffer_params):
    B, T, E = x.shape
    assert E % 2 == 0
    half = E // 2
    assert weight.shape == (E, half), weight.shape
    assert bias.shape == (E,), bias.shape

    # One-time tiny transpose: MXU-friendly (in, out) layout, no per-step
    # in-kernel transpose of the PyTorch (out, in) weight.
    wt = weight.T                 # (half, E)
    b_row = bias.reshape(1, E)

    x_item = jnp.dtype(x.dtype).itemsize
    w_item = jnp.dtype(weight.dtype).itemsize
    pack = _sublane_pack(x.dtype)

    vmem_limit = _vmem_limit_bytes()
    budget = (vmem_limit if vmem_limit is not None else 16 * 1024 * 1024) // 2

    # BlockSpec-level n-split only when the half offset is lane-aligned.
    split_path = (half % 128 == 0)

    # ---- time-tile size ---------------------------------------------------
    if T <= block_m:
        tm = T                                   # full-dim block (ragged OK)
    else:
        tm = max(pack, (block_m // pack) * pack)

    if (not split_path) and B == 1 and T <= block_m and T >= 2 * pack:
        # Ensure >= 2 parallel grid steps so both v7x TensorCores get work
        # (the split path already guarantees this via the n axis).
        tm = min(T, -(-((T + 1) // 2) // pack) * pack)

    w_resident = half * E * w_item * (1 if single_buffer_params else 2)

    def _step_bytes(m):
        x_blk = m * (half if split_path else E) * x_item       # per buffer
        out_blk = m * E * x_item * (1 if split_path else 2)    # per buffer
        acc = m * E * 4                                        # f32 result
        return 2 * x_blk + 2 * out_blk + acc + w_resident + E * 4

    while tm > pack and _step_bytes(tm) > budget:
        tm = max(pack, ((tm // 2) // pack) * pack)

    nt = pl.cdiv(T, tm)

    cost = pl.CostEstimate(
        flops=2 * (B * 2 * T) * half * E,
        transcendentals=0,
        bytes_accessed=(x.size * x_item
                        + weight.size * w_item
                        + bias.size * jnp.dtype(bias.dtype).itemsize
                        + B * 2 * T * E * x_item),
    )

    cp_kwargs = {}
    if vmem_limit is not None:
        cp_kwargs["vmem_limit_bytes"] = int(vmem_limit)

    if split_path:
        grid = (B, 2, nt)
        in_specs = [
            # (tm, half) tile of x; the n-th half is selected by the DMA via
            # the last-dim block index (element offset n*half).
            pl.BlockSpec((None, tm, half), lambda b, n, t: (b, t, n)),
            _param_spec((half, E), lambda b, n, t: (0, 0), single_buffer_params),
            _param_spec((1, E), lambda b, n, t: (0, 0), single_buffer_params),
        ]
        out_specs = pl.BlockSpec((None, None, tm, E),
                                 lambda b, n, t: (b, n, t, 0))
        kernel = _split_kernel
        dims = ("parallel", "parallel", "parallel")
    else:
        grid = (B, nt)
        in_specs = [
            pl.BlockSpec((None, tm, E), lambda b, t: (b, t, 0)),
            _param_spec((half, E), lambda b, t: (0, 0), single_buffer_params),
            _param_spec((1, E), lambda b, t: (0, 0), single_buffer_params),
        ]
        out_specs = pl.BlockSpec((None, 2, tm, E), lambda b, t: (b, 0, t, 0))
        kernel = _fused_kernel
        dims = ("parallel", "parallel")

    out = pl.pallas_call(
        kernel,
        out_shape=jax.ShapeDtypeStruct((B, 2, T, E), x.dtype),
        grid_spec=pltpu.PrefetchScalarGridSpec(
            num_scalar_prefetch=0,
            grid=grid,
            in_specs=in_specs,
            out_specs=out_specs,
        ),
        compiler_params=pltpu.CompilerParams(
            dimension_semantics=dims, **cp_kwargs),
        cost_estimate=cost,
    )(x, wt, b_row)

    # (B, 2, T, E) -> (B, 2T, E): free contiguous view; row n*T + t holds
    # Linear(x[b, t, n*half:(n+1)*half]) == rearrange 'b t (n e) -> b (n t) e'.
    return out.reshape(B, 2 * T, E)


def upsample_forward(x, weight, bias, *, block_m=512):
    """Pallas Upsample.forward.

    x: (B, T, E), weight: (E, E//2) (PyTorch nn.Linear layout), bias: (E,)
    returns (B, 2T, E)
    """
    try:
        return _upsample_impl(x, weight, bias, block_m=block_m,
                              single_buffer_params=True)
    except Exception:
        # Fallback if this Pallas build rejects pipeline_mode=pl.Buffered(1)
        # on grid-resident operands; everything else is unchanged.
        return _upsample_impl(x, weight, bias, block_m=block_m,
                              single_buffer_params=False)


def _reference_forward(x, weight, bias):
    B, T, E = x.shape
    half = E // 2
    x_r = x.reshape(B, T, 2, half).transpose(0, 2, 1, 3).reshape(B, 2 * T, half)
    return x_r @ weight.T + bias


if __name__ == "__main__":
    key = jax.random.PRNGKey(0)

    # Case 1: small module-consistent shapes (batch=2, seq=8, embedding=32).
    # half=16 is not lane-aligned -> exercises the fused in-kernel-split path.
    B, T, E = 2, 8, 32
    k_x, k_w, k_b, k_x2, k_w2, k_b2 = jax.random.split(key, 6)
    x = jax.random.normal(k_x, (B, T, E), dtype=jnp.float32)
    weight = jax.random.normal(k_w, (E, E // 2), dtype=jnp.float32) * 0.05
    bias = jax.random.normal(k_b, (E,), dtype=jnp.float32) * 0.05

    out = jax.block_until_ready(upsample_forward(x, weight, bias))
    ref = _reference_forward(x, weight, bias)
    assert out.shape == (B, 2 * T, E), out.shape
    assert jnp.allclose(out, ref, atol=1e-5, rtol=1e-5), "mismatch vs reference"

    # Case 2: docstring-style shape (1, 5, 256) -- odd T, half=128 lane-aligned
    # -> exercises the BlockSpec n-split path (grid n-axis feeds both TCs).
    B2, T2, E2 = 1, 5, 256
    x2 = jax.random.normal(k_x2, (B2, T2, E2), dtype=jnp.float32)
    weight2 = jax.random.normal(k_w2, (E2, E2 // 2), dtype=jnp.float32) * 0.05
    bias2 = jax.random.normal(k_b2, (E2,), dtype=jnp.float32) * 0.05

    out2 = jax.block_until_ready(upsample_forward(x2, weight2, bias2))
    ref2 = _reference_forward(x2, weight2, bias2)
    assert out2.shape == (B2, 2 * T2, E2), out2.shape
    assert jnp.allclose(out2, ref2, atol=1e-4, rtol=1e-4), "mismatch vs reference (case 2)"

    print("KERNEL_OK")
</pallas_src>

<mosaic_0001>
module attributes {stable_mosaic.version = 11 : i64} {
  func.func @_fused_kernel(%arg0: i32, %arg1: i32, %arg2: memref<1x8x32xf32, #tpu.memory_space<vmem>>, %arg3: memref<16x32xf32, #tpu.memory_space<vmem>>, %arg4: memref<1x32xf32, #tpu.memory_space<vmem>>, %arg5: memref<1x2x8x32xf32, #tpu.memory_space<vmem>>) attributes {dimension_semantics = [#tpu.dimension_semantics<parallel>, #tpu.dimension_semantics<parallel>], iteration_bounds = array<i64: 2, 1>, scalar_prefetch = 0 : i64, scratch_operands = 0 : i64, tpu.core_type = #tpu.core_type<tc>, window_params = [{transform_indices = @transform_0, window_bounds = array<i64: 1, 8, 32>}, {pipeline_mode = #tpu.pipeline_mode<synchronous>, transform_indices = @transform_1, window_bounds = array<i64: 16, 32>}, {pipeline_mode = #tpu.pipeline_mode<synchronous>, transform_indices = @transform_2, window_bounds = array<i64: 1, 32>}, {transform_indices = @transform_3, window_bounds = array<i64: 1, 2, 8, 32>}]} {
    %c0 = arith.constant 0 : index
    %c0_0 = arith.constant 0 : index
    %c0_1 = arith.constant 0 : index
    %0 = vector.load %arg2[%c0, %c0_0, %c0_1] : memref<1x8x32xf32, #tpu.memory_space<vmem>>, vector<1x8x32xf32>
    %1 = vector.shape_cast %0 : vector<1x8x32xf32> to vector<8x32xf32>
    %c0_2 = arith.constant 0 : index
    %c0_3 = arith.constant 0 : index
    %2 = vector.load %arg3[%c0_2, %c0_3] : memref<16x32xf32, #tpu.memory_space<vmem>>, vector<16x32xf32>
    %c0_4 = arith.constant 0 : index
    %c0_5 = arith.constant 0 : index
    %3 = vector.load %arg4[%c0_4, %c0_5] : memref<1x32xf32, #tpu.memory_space<vmem>>, vector<1x32xf32>
    %4 = vector.extract_strided_slice %1 {offsets = [0, 0], sizes = [8, 16], strides = [1, 1]} : vector<8x32xf32> to vector<8x16xf32>
    %cst = arith.constant dense<0.000000e+00> : vector<8x32xf32>
    %5 = tpu.matmul %4, %2, %cst {dimension_numbers = #tpu.dot_dimension_numbers<[1], [0], [0], [1], [0, 0, 1, 1], [], []>} : vector<8x16xf32>, vector<16x32xf32>, vector<8x32xf32> -> vector<8x32xf32>
    %6 = vector.broadcast %3 : vector<1x32xf32> to vector<8x32xf32>
    %7 = arith.addf %5, %6 : vector<8x32xf32>
    %c0_6 = arith.constant 0 : index
    %c0_7 = arith.constant 0 : index
    %c0_8 = arith.constant 0 : index
    %c0_9 = arith.constant 0 : index
    %8 = vector.load %arg5[%c0_6, %c0_7, %c0_8, %c0_9] : memref<1x2x8x32xf32, #tpu.memory_space<vmem>>, vector<1x1x8x32xf32>
    %9 = vector.shape_cast %8 : vector<1x1x8x32xf32> to vector<8x32xf32>
    %10 = vector.shape_cast %7 : vector<8x32xf32> to vector<1x1x8x32xf32>
    tpu.vector_store %arg5[%c0_6, %c0_7, %c0_8, %c0_9], %10 {strides = array<i32>} : memref<1x2x8x32xf32, #tpu.memory_space<vmem>>, vector<1x1x8x32xf32>,
    %11 = vector.extract_strided_slice %1 {offsets = [0, 16], sizes = [8, 16], strides = [1, 1]} : vector<8x32xf32> to vector<8x16xf32>
    %cst_10 = arith.constant dense<0.000000e+00> : vector<8x32xf32>
    %12 = tpu.matmul %11, %2, %cst_10 {dimension_numbers = #tpu.dot_dimension_numbers<[1], [0], [0], [1], [0, 0, 1, 1], [], []>} : vector<8x16xf32>, vector<16x32xf32>, vector<8x32xf32> -> vector<8x32xf32>
    %13 = vector.broadcast %3 : vector<1x32xf32> to vector<8x32xf32>
    %14 = arith.addf %12, %13 : vector<8x32xf32>
    %c0_11 = arith.constant 0 : index
    %c1 = arith.constant 1 : index
    %c0_12 = arith.constant 0 : index
    %c0_13 = arith.constant 0 : index
    %15 = vector.load %arg5[%c0_11, %c1, %c0_12, %c0_13] : memref<1x2x8x32xf32, #tpu.memory_space<vmem>>, vector<1x1x8x32xf32>
    %16 = vector.shape_cast %15 : vector<1x1x8x32xf32> to vector<8x32xf32>
    %17 = vector.shape_cast %14 : vector<8x32xf32> to vector<1x1x8x32xf32>
    tpu.vector_store %arg5[%c0_11, %c1, %c0_12, %c0_13], %17 {strides = array<i32>} : memref<1x2x8x32xf32, #tpu.memory_space<vmem>>, vector<1x1x8x32xf32>,
    return
  }
  func.func @transform_0(%arg0: i32, %arg1: i32) -> (i32, i32, i32) {
    %c0_i32 = arith.constant 0 : i32
    %c0_i32_0 = arith.constant 0 : i32
    return %arg0, %arg1, %c0_i32 : i32, i32, i32
  }
  func.func @transform_1(%arg0: i32, %arg1: i32) -> (i32, i32) {
    %c0_i32 = arith.constant 0 : i32
    %c0_i32_0 = arith.constant 0 : i32
    %c0_i32_1 = arith.constant 0 : i32
    return %c0_i32, %c0_i32_0 : i32, i32
  }
  func.func @transform_2(%arg0: i32, %arg1: i32) -> (i32, i32) {
    %c0_i32 = arith.constant 0 : i32
    %c0_i32_0 = arith.constant 0 : i32
    %c0_i32_1 = arith.constant 0 : i32
    return %c0_i32, %c0_i32_0 : i32, i32
  }
  func.func @transform_3(%arg0: i32, %arg1: i32) -> (i32, i32, i32, i32) {
    %c0_i32 = arith.constant 0 : i32
    %c0_i32_0 = arith.constant 0 : i32
    %c0_i32_1 = arith.constant 0 : i32
    return %arg0, %c0_i32, %arg1, %c0_i32_0 : i32, i32, i32, i32
  }
}

module attributes {stable_mosaic.version = 11 : i64} {
  func.func @_fused_kernel(%arg0: i32, %arg1: i32, %arg2: memref<1x8x32xf32, #tpu.memory_space<vmem>>, %arg3: memref<16x32xf32, #tpu.memory_space<vmem>>, %arg4: memref<1x32xf32, #tpu.memory_space<vmem>>, %arg5: memref<1x2x8x32xf32, #tpu.memory_space<vmem>>) attributes {dimension_semantics = [#tpu.dimension_semantics<parallel>, #tpu.dimension_semantics<parallel>], iteration_bounds = array<i64: 2, 1>, scalar_prefetch = 0 : i64, scratch_operands = 0 : i64, tpu.core_type = #tpu.core_type<tc>, window_params = [{transform_indices = @transform_0, window_bounds = array<i64: 1, 8, 32>}, {pipeline_mode = #tpu.pipeline_mode<synchronous>, transform_indices = @transform_1, window_bounds = array<i64: 16, 32>}, {pipeline_mode = #tpu.pipeline_mode<synchronous>, transform_indices = @transform_2, window_bounds = array<i64: 1, 32>}, {transform_indices = @transform_3, window_bounds = array<i64: 1, 2, 8, 32>}]} {
    %c0 = arith.constant 0 : index
    %c0_0 = arith.constant 0 : index
    %c0_1 = arith.constant 0 : index
    %0 = vector.load %arg2[%c0, %c0_0, %c0_1] : memref<1x8x32xf32, #tpu.memory_space<vmem>>, vector<1x8x32xf32>
    %1 = vector.shape_cast %0 : vector<1x8x32xf32> to vector<8x32xf32>
    %c0_2 = arith.constant 0 : index
    %c0_3 = arith.constant 0 : index
    %2 = vector.load %arg3[%c0_2, %c0_3] : memref<16x32xf32, #tpu.memory_space<vmem>>, vector<16x32xf32>
    %c0_4 = arith.constant 0 : index
    %c0_5 = arith.constant 0 : index
    %3 = vector.load %arg4[%c0_4, %c0_5] : memref<1x32xf32, #tpu.memory_space<vmem>>, vector<1x32xf32>
    %4 = vector.extract_strided_slice %1 {offsets = [0, 0], sizes = [8, 16], strides = [1, 1]} : vector<8x32xf32> to vector<8x16xf32>
    %cst = arith.constant dense<0.000000e+00> : vector<8x32xf32>
    %5 = tpu.matmul %4, %2, %cst {dimension_numbers = #tpu.dot_dimension_numbers<[1], [0], [0], [1], [0, 0, 1, 1], [], []>} : vector<8x16xf32>, vector<16x32xf32>, vector<8x32xf32> -> vector<8x32xf32>
    %6 = vector.broadcast %3 : vector<1x32xf32> to vector<8x32xf32>
    %7 = arith.addf %5, %6 : vector<8x32xf32>
    %c0_6 = arith.constant 0 : index
    %c0_7 = arith.constant 0 : index
    %c0_8 = arith.constant 0 : index
    %c0_9 = arith.constant 0 : index
    %8 = vector.load %arg5[%c0_6, %c0_7, %c0_8, %c0_9] : memref<1x2x8x32xf32, #tpu.memory_space<vmem>>, vector<1x1x8x32xf32>
    %9 = vector.shape_cast %8 : vector<1x1x8x32xf32> to vector<8x32xf32>
    %10 = vector.shape_cast %7 : vector<8x32xf32> to vector<1x1x8x32xf32>
    tpu.vector_store %arg5[%c0_6, %c0_7, %c0_8, %c0_9], %10 {strides = array<i32>} : memref<1x2x8x32xf32, #tpu.memory_space<vmem>>, vector<1x1x8x32xf32>,
    %11 = vector.extract_strided_slice %1 {offsets = [0, 16], sizes = [8, 16], strides = [1, 1]} : vector<8x32xf32> to vector<8x16xf32>
    %cst_10 = arith.constant dense<0.000000e+00> : vector<8x32xf32>
    %12 = tpu.matmul %11, %2, %cst_10 {dimension_numbers = #tpu.dot_dimension_numbers<[1], [0], [0], [1], [0, 0, 1, 1], [], []>} : vector<8x16xf32>, vector<16x32xf32>, vector<8x32xf32> -> vector<8x32xf32>
    %13 = vector.broadcast %3 : vector<1x32xf32> to vector<8x32xf32>
    %14 = arith.addf %12, %13 : vector<8x32xf32>
    %c0_11 = arith.constant 0 : index
    %c1 = arith.constant 1 : index
    %c0_12 = arith.constant 0 : index
    %c0_13 = arith.constant 0 : index
    %15 = vector.load %arg5[%c0_11, %c1, %c0_12, %c0_13] : memref<1x2x8x32xf32, #tpu.memory_space<vmem>>, vector<1x1x8x32xf32>
    %16 = vector.shape_cast %15 : vector<1x1x8x32xf32> to vector<8x32xf32>
    %17 = vector.shape_cast %14 : vector<8x32xf32> to vector<1x1x8x32xf32>
    tpu.vector_store %arg5[%c0_11, %c1, %c0_12, %c0_13], %17 {strides = array<i32>} : memref<1x2x8x32xf32, #tpu.memory_space<vmem>>, vector<1x1x8x32xf32>,
    return
  }
  func.func @transform_0(%arg0: i32, %arg1: i32) -> (i32, i32, i32) {
    %c0_i32 = arith.constant 0 : i32
    %c0_i32_0 = arith.constant 0 : i32
    return %arg0, %arg1, %c0_i32 : i32, i32, i32
  }
  func.func @transform_1(%arg0: i32, %arg1: i32) -> (i32, i32) {
    %c0_i32 = arith.constant 0 : i32
    %c0_i32_0 = arith.constant 0 : i32
    %c0_i32_1 = arith.constant 0 : i32
    return %c0_i32, %c0_i32_0 : i32, i32
  }
  func.func @transform_2(%arg0: i32, %arg1: i32) -> (i32, i32) {
    %c0_i32 = arith.constant 0 : i32
    %c0_i32_0 = arith.constant 0 : i32
    %c0_i32_1 = arith.constant 0 : i32
    return %c0_i32, %c0_i32_0 : i32, i32
  }
  func.func @transform_3(%arg0: i32, %arg1: i32) -> (i32, i32, i32, i32) {
    %c0_i32 = arith.constant 0 : i32
    %c0_i32_0 = arith.constant 0 : i32
    %c0_i32_1 = arith.constant 0 : i32
    return %arg0, %c0_i32, %arg1, %c0_i32_0 : i32, i32, i32, i32
  }
}

</mosaic_0001>

<llo_original>
// kernel: _upsample_impl.1
$region0: #{_upsample_impl.1}
  #allocation0 [shape = 'u32[]', space=smem, size = 0x4, offset = 0x4, fixed_abs, tag = 'smem constant byte address 0x4 - core index']
  #allocation1 [shape = 'u32[144,128]{1,0:T(1,128)}', space=vmem, size = 0x12000, scoped, tag = 'internal scratch']
  %s0 = inlined_call_operand.hbm [shape: f32[2,8,32], index: 0, kind: input, shape index: {}]
  %s1 = inlined_call_operand.hbm [shape: f32[16,32], index: 1, kind: input, shape index: {}]
  %s2 = inlined_call_operand.vmem [shape: f32[1,32], index: 2, kind: input, shape index: {}]
  %s3 = inlined_call_operand.hbm [shape: f32[2,2,8,32], index: 3, kind: output, shape index: {}]
  %s4 = sld [smem:[#allocation0]]
  $region53: #{_upsample_impl.1} parent=0
    _
  %s6 = ssub.s32 1, %s4
  %s7 = scalar_select 0, %s6, %s4
  $region1: #{_upsample_impl.1} parent=0
    #allocation2 [shape = 'u8[8192]{0}', space=vmem, size = 0x2000, scoped, tag = 'input window, operand 0']
    #allocation3 [shape = 's32[2]{0}', space=sflag, size = 0x8, scoped, tag = 'scoped memory for _upsample_impl.1']
    #allocation4 [shape = 's32[2]{0}', space=sflag, size = 0x8, scoped, tag = 'scoped memory for _upsample_impl.1']
    #allocation5 [shape = 'u8[8192]{0}', space=vmem, size = 0x2000, scoped, tag = 'input window, operand 1, single buffered']
    #allocation6 [shape = 's32[1]{0}', space=sflag, size = 0x4, scoped, tag = 'scoped memory for _upsample_impl.1']
    #allocation7 [shape = 'u8[16384]{0}', space=vmem, size = 0x4000, scoped, tag = 'output window, operand 0']
    %8 = vsyncpa [#allocation3], 0
    %s9 = scalar_lea.sflag [#allocation3], 1
    %10 = vsyncpa %s9, 0
    %11 = vsyncpa [#allocation6], 0
    %12 = vsyncpa [#allocation4], 0
    %s13 = scalar_lea.sflag [#allocation4], 1
    %14 = vsyncpa %s13, 0
    loop: start=0, step=1, limit=4
    $region2: #{_upsample_impl.1} parent=1 // loop_pre_header
      _
    $region3: #{_upsample_impl.1} parent=1 // loop_header
      %s16 = sphi 0, %s20
      %p17 = scmp.ge.s32.totalorder %s16, 4
      %s23 = sphi 0, %s35
      %s24 = sphi 0, %s31
      %s25 = sphi 0, %s23
      %s26 = sphi 0, %s24
      %s27 = sphi 0, %s25
      %s28 = sphi 0, %s26
      %s40 = sphi 0, %s42
      %s43 = sphi 0, %s40
      %s44 = sphi 0, %s43
      %s60 = sphi 0, %s44
      %s64 = sphi 0, %s64
      %s66 = sphi 0, %s64
      %s67 = sphi 0, %s66
      %s81 = sphi 0, %s67
      %s85 = sphi 0, %s85
      %s87 = sphi 0, %s85
      %s88 = sphi 0, %s87
      %s102 = sphi 0, %s88
      %s110 = sphi 0, %s112
      %s113 = sphi 0, %s110
      %s114 = sphi 0, %s113
      %s130 = sphi 0, %s114
    $region4: #{_upsample_impl.1} parent=1 // loop_header_branch
      %19 = sbr.rel (%p17) target = $region8
    $region5: #{_upsample_impl.1} parent=1 // loop_body
      %s21 = ssub.s32 %s16, 1
      %s22 = ssub.s32 %s16, 2
      %s29 = sadd.s32 1, %s24
      %p30 = scmp.ge.s32.totalorder %s29, 1
      %s31 = scalar_select %p30, 0, %s29
      %s32 = sadd.s32 1, %s23
      %s33 = scalar_select %p30, %s32, %s23
      %p34 = scmp.ge.s32.totalorder %s33, 2
      %s35 = scalar_select %p34, 0, %s33
      %s36 = ssub.s32 %s23, %s35
      %s37 = ssub.s32 %s24, %s31
      %s38 = sor.u32 %s36, %s37
      %p39 = scmp.eq.s32.totalorder %s38, 0
      %s41 = sadd.s32 %s40, 1
      %s42 = scalar_select %p39, %s40, %s41
      %p45 = pneg %p39
      %p46 = scmp.eq.s32.totalorder %s16, 1
      %p47 = por %p45, %p46
      %p48 = scmp.ne.s32.totalorder %s40, %s43
      %p49 = scmp.eq.s32.totalorder %s16, 0
      %p50 = por %p48, %p49
      %p51 = scmp.ne.s32.totalorder %s40, %s43
      %p52 = scmp.eq.s32.totalorder %s21, 1
      %p53 = por %p51, %p52
      %p54 = scmp.ne.s32.totalorder %s43, %s44
      %p55 = scmp.eq.s32.totalorder %s21, 0
      %p56 = por %p54, %p55
      %p57 = scmp.ne.s32.totalorder %s43, %s44
      %p58 = scmp.eq.s32.totalorder %s22, 1
      %p59 = por %p57, %p58
      %p61 = scmp.ne.s32.totalorder %s44, %s60
      %p62 = scmp.eq.s32.totalorder %s22, 0
      %p63 = por %p61, %p62
      %s65 = sadd.s32 %s64, 1
      %p68 = scmp.eq.s32.totalorder %s16, 1
      %p69 = scmp.ne.s32.totalorder %s64, %s66
      %p70 = scmp.eq.s32.totalorder %s16, 0
      %p71 = por %p69, %p70
      %p72 = scmp.ne.s32.totalorder %s64, %s66
      %p73 = scmp.eq.s32.totalorder %s21, 1
      %p74 = por %p72, %p73
      %p75 = scmp.ne.s32.totalorder %s66, %s67
      %p76 = scmp.eq.s32.totalorder %s21, 0
      %p77 = por %p75, %p76
      %p78 = scmp.ne.s32.totalorder %s66, %s67
      %p79 = scmp.eq.s32.totalorder %s22, 1
      %p80 = por %p78, %p79
      %p82 = scmp.ne.s32.totalorder %s67, %s81
      %p83 = scmp.eq.s32.totalorder %s22, 0
      %p84 = por %p82, %p83
      %s86 = sadd.s32 %s85, 1
      %p89 = scmp.eq.s32.totalorder %s16, 1
      %p90 = scmp.ne.s32.totalorder %s85, %s87
      %p91 = scmp.eq.s32.totalorder %s16, 0
      %p92 = por %p90, %p91
      %p93 = scmp.ne.s32.totalorder %s85, %s87
      %p94 = scmp.eq.s32.totalorder %s21, 1
      %p95 = por %p93, %p94
      %p96 = scmp.ne.s32.totalorder %s87, %s88
      %p97 = scmp.eq.s32.totalorder %s21, 0
      %p98 = por %p96, %p97
      %p99 = scmp.ne.s32.totalorder %s87, %s88
      %p100 = scmp.eq.s32.totalorder %s22, 1
      %p101 = por %p99, %p100
      %p103 = scmp.ne.s32.totalorder %s88, %s102
      %p104 = scmp.eq.s32.totalorder %s22, 0
      %p105 = por %p103, %p104
      %s106 = ssub.s32 %s23, %s35
      %s107 = ssub.s32 %s24, %s31
      %s108 = sor.u32 %s106, %s107
      %p109 = scmp.eq.s32.totalorder %s108, 0
      %s111 = sadd.s32 %s110, 1
      %s112 = scalar_select %p109, %s110, %s111
      %p115 = pneg %p109
      %p116 = scmp.eq.s32.totalorder %s16, 1
      %p117 = por %p115, %p116
      %p118 = scmp.ne.s32.totalorder %s110, %s113
      %p119 = scmp.eq.s32.totalorder %s16, 0
      %p120 = por %p118, %p119
      %p121 = scmp.ne.s32.totalorder %s110, %s113
      %p122 = scmp.eq.s32.totalorder %s21, 1
      %p123 = por %p121, %p122
      %p124 = scmp.ne.s32.totalorder %s113, %s114
      %p125 = scmp.eq.s32.totalorder %s21, 0
      %p126 = por %p124, %p125
      %p127 = scmp.ne.s32.totalorder %s113, %s114
      %p128 = scmp.eq.s32.totalorder %s22, 1
      %p129 = por %p127, %p128
      %p131 = scmp.ne.s32.totalorder %s114, %s130
      %p132 = scmp.eq.s32.totalorder %s22, 0
      %p133 = por %p131, %p132
      %p134 = scmp.le.s32.totalorder 1, %s16
      %p135 = scmp.lt.s32.totalorder %s16, 3
      %p136 = pnand %p134, %p135
      %p137 = pneg %p136
      // Predicated region
      $region9: #{_upsample_impl.1} parent=5 // pred_check
        _
      $region10: #{_upsample_impl.1} parent=5 // pred_check_branch
        %139 = sbr.rel (%p136) target = $region12
      $region11: #{_upsample_impl.1} parent=5 // pred_region
        %s140 = ssub.s32 %s16, 1
        // Predicated region
        $region13: #{_upsample_impl.1} parent=11 // pred_check
          %p141 = pneg %p77
        $region14: #{_upsample_impl.1} parent=11 // pred_check_branch
          %143 = sbr.rel (%p141) target = $region16
        $region15: #{_upsample_impl.1} parent=11 // pred_region
          %s145 = ssub.s32 256, 256
          %146 = vsyncadd [#allocation6], %s145
          %s147 = sshll.u32 [#allocation5], 4
          %s148 = int_to_ptr.vmem [resolvable:$true] %s147
          %153 = dma.hbm_to_vmem [thread:$0]  %s1, 256, %s148, [#allocation6], 128, 128, 8
        $region16: #{_upsample_impl.1} parent=11 // pred_fallthru
          _
        // Predicated region
        $region17: #{_upsample_impl.1} parent=11 // pred_check
          %p154 = pneg %p98
        $region18: #{_upsample_impl.1} parent=11 // pred_check_branch
          %156 = sbr.rel (%p154) target = $region20
        $region19: #{_upsample_impl.1} parent=11 // pred_region
          _
        $region20: #{_upsample_impl.1} parent=11 // pred_fallthru
          _
      $region12: #{_upsample_impl.1} parent=5 // pred_fallthru
        _
      %p157 = scmp.lt.s32.totalorder %s16, 2
      // Predicated region
      $region21: #{_upsample_impl.1} parent=5 // pred_check
        %p158 = pneg %p157
      $region22: #{_upsample_impl.1} parent=5 // pred_check_branch
        %160 = sbr.rel (%p158) target = $region24
      $region23: #{_upsample_impl.1} parent=5 // pred_region
        // Predicated region
        $region25: #{_upsample_impl.1} parent=23 // pred_check
          %p161 = pneg %p50
        $region26: #{_upsample_impl.1} parent=23 // pred_check_branch
          %163 = sbr.rel (%p161) target = $region28
        $region27: #{_upsample_impl.1} parent=23 // pred_region
          %s164 = sand.u32 %s40, 1
          %s165 = scalar_lea.sflag [#allocation3], %s164
          %s166 = sand.u32 %s40, 1
          %s167 = smul.addr %s166, 8
          %s168 = scalar_lea.vmem [#allocation2], %s167
          %s170 = ssub.s32 128, 128
          %171 = vsyncadd %s165, %s170
          %s172 = sadd.s32 %s24, %s23
          %s173 = smul.addr %s172, 128
          %s174 = scalar_lea.hbm %s0, %s173
          %s176 = sshll.u32 %s168, 4
          %s177 = int_to_ptr.vmem [resolvable:$true] %s176
          %179 = dma.hbm_to_vmem [thread:$0]  %s174, 128, %s177, %s165
        $region28: #{_upsample_impl.1} parent=23 // pred_fallthru
          _
      $region24: #{_upsample_impl.1} parent=5 // pred_fallthru
        _
      %p180 = scmp.le.s32.totalorder 1, %s16
      %p181 = scmp.lt.s32.totalorder %s16, 3
      %p182 = pnand %p180, %p181
      %p183 = pneg %p182
      // Predicated region
      $region29: #{_upsample_impl.1} parent=5 // pred_check
        _
      $region30: #{_upsample_impl.1} parent=5 // pred_check_branch
        %185 = sbr.rel (%p182) target = $region32
      $region31: #{_upsample_impl.1} parent=5 // pred_region
        %s186 = ssub.s32 %s16, 1
        %s187 = sand.u32 %s43, 1
        %s188 = scalar_lea.sflag [#allocation3], %s187
        %s189 = sand.u32 %s43, 1
        %s190 = smul.addr %s189, 8
        %s191 = scalar_lea.vmem [#allocation2], %s190
        // Predicated region
        $region33: #{_upsample_impl.1} parent=31 // pred_check
          %p192 = pneg %p56
        $region34: #{_upsample_impl.1} parent=31 // pred_check_branch
          %194 = sbr.rel (%p192) target = $region36
        $region35: #{_upsample_impl.1} parent=31 // pred_region
          %195 = dma.done %s188, 128
        $region36: #{_upsample_impl.1} parent=31 // pred_fallthru
          _
        // Predicated region
        $region37: #{_upsample_impl.1} parent=31 // pred_check
          %p196 = pneg %p77
        $region38: #{_upsample_impl.1} parent=31 // pred_check_branch
          %198 = sbr.rel (%p196) target = $region40
        $region39: #{_upsample_impl.1} parent=31 // pred_region
          %199 = dma.done [#allocation6], 256
        $region40: #{_upsample_impl.1} parent=31 // pred_fallthru
          _
        %s200 = sand.u32 %s43, 1
        %s201 = scalar_lea.sflag [#allocation3], %s200
        %s202 = sand.u32 %s43, 1
        %s203 = smul.addr %s202, 8
        %s204 = scalar_lea.vmem [#allocation2], %s203
        %p205 = pneg %p56
        %p206 = pneg %p53
        %p207 = pneg %p77
        %p208 = pneg %p74
        %p209 = pneg %p98
        %p210 = pneg %p95
        %p211 = pneg %p126
        %p212 = pneg %p123
        %s213 = sand.u32 %s113, 1
        %s214 = scalar_lea.sflag [#allocation4], %s213
        %s215 = sand.u32 %s113, 1
        %s216 = smul.addr %s215, 16
        %s217 = scalar_lea.vmem [#allocation7], %s216
        %v218 = vld [vmem:[%s191] sm:$0xff]
        %v219 = vld [vmem:[#allocation5] sm:$0xff]
        %v220 = vld [vmem:[#allocation5 + $0x8] sm:$0xff]
        %v221 = vld [vmem:[%s2] sm:$0x1]
        %v223 = vlaneseq
        %v224 = vshrl.u32 %v223, 7
        %v225 = vsub.s32 0, %v224
        %v226 = vrot.slane %v221, %v225
        %vm228 = vcmask 130048
        %v230 = vsel %vm228, %v218, 0
        %232 = vmatprep.subr.mxu0 0.0
        %233 = vmatpush1.msra.mxu0 %v219
        %234 = vmatprep.subr.mxu0 0.0
        %235 = vmatpush1.msra.mxu0 %v220
        %236 = vmatprep.subr.mxu0 0.0
        %237 = vmatpush1.msra.mxu0 0.0
        %238 = vmatprep.subr.mxu0 0.0
        %239 = vmatpush1.msra.mxu0 0.0
        %240 = vmatprep.subr.mxu0 0.0
        %241 = vmatpush1.msra.mxu0 0.0
        %242 = vmatprep.subr.mxu0 0.0
        %243 = vmatpush1.msra.mxu0 0.0
        %244 = vmatprep.subr.mxu0 0.0
        %245 = vmatpush1.msra.mxu0 0.0
        %246 = vmatprep.subr.mxu0 0.0
        %247 = vmatpush1.msra.mxu0 0.0
        %248 = vmatprep.subr.mxu0 0.0
        %249 = vmatpush1.msra.mxu0 0.0
        %250 = vmatprep.subr.mxu0 0.0
        %251 = vmatpush1.msra.mxu0 0.0
        %252 = vmatprep.subr.mxu0 0.0
        %253 = vmatpush1.msra.mxu0 0.0
        %254 = vmatprep.subr.mxu0 0.0
        %255 = vmatpush1.msra.mxu0 0.0
        %256 = vmatprep.subr.mxu0 0.0
        %257 = vmatpush1.msra.mxu0 0.0
        %258 = vmatprep.subr.mxu0 0.0
        %259 = vmatpush1.msra.mxu0 0.0
        %260 = vmatprep.subr.mxu0 0.0
        %261 = vmatpush1.msra.mxu0 0.0
        %262 = vmatprep.subr.mxu0 0.0
        %263 = vmatpush1.msra.mxu0 0.0
        %264 = vmatprep.subr.mxu0 0.0
        %265 = vmatpush1.msra.mxu0 0.0
        %266 = vmatprep.subr.mxu0 0.0
        %267 = vmatpush1.msra.mxu0 0.0
        %268 = vmatprep.subr.mxu0 0.0
        %269 = vmatpush1.msra.mxu0 0.0
        %270 = vmatprep.subr.mxu0 0.0
        %271 = vmatpush1.msra.mxu0 0.0
        %272 = vmatprep.subr.mxu0 0.0
        %273 = vmatpush1.msra.mxu0 0.0
        %274 = vmatprep.subr.mxu0 0.0
        %275 = vmatpush1.msra.mxu0 0.0
        %276 = vmatprep.subr.mxu0 0.0
        %277 = vmatpush1.msra.mxu0 0.0
        %278 = vmatprep.subr.mxu0 0.0
        %279 = vmatpush1.msra.mxu0 0.0
        %280 = vmatprep.subr.mxu0 0.0
        %281 = vmatpush1.msra.mxu0 0.0
        %282 = vmatprep.subr.mxu0 0.0
        %283 = vmatpush1.msra.mxu0 0.0
        %284 = vmatprep.subr.mxu0 0.0
        %285 = vmatpush1.msra.mxu0 0.0
        %286 = vmatprep.subr.mxu0 0.0
        %287 = vmatpush1.msra.mxu0 0.0
        %288 = vmatprep.subr.mxu0 0.0
        %289 = vmatpush1.msra.mxu0 0.0
        %290 = vmatprep.subr.mxu0 0.0
        %291 = vmatpush1.msra.mxu0 0.0
        %292 = vmatprep.subr.mxu0 0.0
        %293 = vmatpush1.msra.mxu0 0.0
        %294 = vmatprep.subr.mxu0 0.0
        %295 = vmatpush1.msra.mxu0 0.0
        %296 = vmatprep.mubr.f32.mxu0 0.0
        %297 = vmatmul.mubr.f32.gmra.mrb[0].mxu0 %v230
        %v298 = vpop.f32.mrb[0].mxu0
        %v299 = vadd.f32 %v226, %v298
        %v300 = vpop.f32.mrb[0].mxu0
        %301 = vdwg.mxu0
        %vm302 = vcmask 261120
        %303 = vst.msk [vmem:[%s217] sm:$0xff] %vm302, %v299
        %304 = vrot.lane.b32.xlu0 %v218, 112
        %v305 = vpop.permute.xlu0 %304
        %v306 = vsel %vm228, %v305, 0
        %308 = vmatprep.subr.mxu0 0.0
        %309 = vmatpush1.msra.mxu0 %v219
        %310 = vmatprep.subr.mxu0 0.0
        %311 = vmatpush1.msra.mxu0 %v220
        %312 = vmatprep.subr.mxu0 0.0
        %313 = vmatpush1.msra.mxu0 0.0
        %314 = vmatprep.subr.mxu0 0.0
        %315 = vmatpush1.msra.mxu0 0.0
        %316 = vmatprep.subr.mxu0 0.0
        %317 = vmatpush1.msra.mxu0 0.0
        %318 = vmatprep.subr.mxu0 0.0
        %319 = vmatpush1.msra.mxu0 0.0
        %320 = vmatprep.subr.mxu0 0.0
        %321 = vmatpush1.msra.mxu0 0.0
        %322 = vmatprep.subr.mxu0 0.0
        %323 = vmatpush1.msra.mxu0 0.0
        %324 = vmatprep.subr.mxu0 0.0
        %325 = vmatpush1.msra.mxu0 0.0
        %326 = vmatprep.subr.mxu0 0.0
        %327 = vmatpush1.msra.mxu0 0.0
        %328 = vmatprep.subr.mxu0 0.0
        %329 = vmatpush1.msra.mxu0 0.0
        %330 = vmatprep.subr.mxu0 0.0
        %331 = vmatpush1.msra.mxu0 0.0
        %332 = vmatprep.subr.mxu0 0.0
        %333 = vmatpush1.msra.mxu0 0.0
        %334 = vmatprep.subr.mxu0 0.0
        %335 = vmatpush1.msra.mxu0 0.0
        %336 = vmatprep.subr.mxu0 0.0
        %337 = vmatpush1.msra.mxu0 0.0
        %338 = vmatprep.subr.mxu0 0.0
        %339 = vmatpush1.msra.mxu0 0.0
        %340 = vmatprep.subr.mxu0 0.0
        %341 = vmatpush1.msra.mxu0 0.0
        %342 = vmatprep.subr.mxu0 0.0
        %343 = vmatpush1.msra.mxu0 0.0
        %344 = vmatprep.subr.mxu0 0.0
        %345 = vmatpush1.msra.mxu0 0.0
        %346 = vmatprep.subr.mxu0 0.0
        %347 = vmatpush1.msra.mxu0 0.0
        %348 = vmatprep.subr.mxu0 0.0
        %349 = vmatpush1.msra.mxu0 0.0
        %350 = vmatprep.subr.mxu0 0.0
        %351 = vmatpush1.msra.mxu0 0.0
        %352 = vmatprep.subr.mxu0 0.0
        %353 = vmatpush1.msra.mxu0 0.0
        %354 = vmatprep.subr.mxu0 0.0
        %355 = vmatpush1.msra.mxu0 0.0
        %356 = vmatprep.subr.mxu0 0.0
        %357 = vmatpush1.msra.mxu0 0.0
        %358 = vmatprep.subr.mxu0 0.0
        %359 = vmatpush1.msra.mxu0 0.0
        %360 = vmatprep.subr.mxu0 0.0
        %361 = vmatpush1.msra.mxu0 0.0
        %362 = vmatprep.subr.mxu0 0.0
        %363 = vmatpush1.msra.mxu0 0.0
        %364 = vmatprep.subr.mxu0 0.0
        %365 = vmatpush1.msra.mxu0 0.0
        %366 = vmatprep.subr.mxu0 0.0
        %367 = vmatpush1.msra.mxu0 0.0
        %368 = vmatprep.subr.mxu0 0.0
        %369 = vmatpush1.msra.mxu0 0.0
        %370 = vmatprep.subr.mxu0 0.0
        %371 = vmatpush1.msra.mxu0 0.0
        %372 = vmatprep.mubr.f32.mxu0 0.0
        %373 = vmatmul.mubr.f32.gmra.mrb[0].mxu0 %v306
        %v374 = vpop.f32.mrb[0].mxu0
        %v375 = vadd.f32 %v226, %v374
        %v376 = vpop.f32.mrb[0].mxu0
        %377 = vdwg.mxu0
        %s378 = scalar_lea.vmem %s217, 8 [#allocation7]
        %379 = vst.msk [vmem:[%s378] sm:$0xff] %vm302, %v375
        %s380 = sand.u32 %s113, 1
        %s381 = scalar_lea.sflag [#allocation4], %s380
        %s382 = sand.u32 %s113, 1
        %s383 = smul.addr %s382, 16
        %s384 = scalar_lea.vmem [#allocation7], %s383
        // Predicated region
        $region41: #{_upsample_impl.1} parent=31 // pred_check
          %p385 = pneg %p123
        $region42: #{_upsample_impl.1} parent=31 // pred_check_branch
          %387 = sbr.rel (%p385) target = $region44
        $region43: #{_upsample_impl.1} parent=31 // pred_region
          %s389 = ssub.s32 256, 256
          %390 = vsyncadd %s381, %s389
          %s391 = smul.addr %s25, 2
          %s392 = sadd.s32 %s26, %s391
          %s393 = smul.addr %s392, 128
          %s394 = scalar_lea.hbm %s3, %s393
          %s395 = sshll.u32 %s384, 4
          %s396 = int_to_ptr.vmem [resolvable:$true] %s395
          %401 = dma.vmem_to_hbm [thread:$0]  %s396, 256, %s394, %s381, 128, 128, 8
        $region44: #{_upsample_impl.1} parent=31 // pred_fallthru
          _
      $region32: #{_upsample_impl.1} parent=5 // pred_fallthru
        _
      %p402 = scmp.le.s32.totalorder 2, %s16
      // Predicated region
      $region45: #{_upsample_impl.1} parent=5 // pred_check
        %p403 = pneg %p402
      $region46: #{_upsample_impl.1} parent=5 // pred_check_branch
        %405 = sbr.rel (%p403) target = $region48
      $region47: #{_upsample_impl.1} parent=5 // pred_region
        %s406 = ssub.s32 %s16, 2
        // Predicated region
        $region49: #{_upsample_impl.1} parent=47 // pred_check
          %p407 = pneg %p129
        $region50: #{_upsample_impl.1} parent=47 // pred_check_branch
          %409 = sbr.rel (%p407) target = $region52
        $region51: #{_upsample_impl.1} parent=47 // pred_region
          %s410 = sand.u32 %s114, 1
          %s411 = scalar_lea.sflag [#allocation4], %s410
          %s412 = sand.u32 %s114, 1
          %s413 = smul.addr %s412, 16
          %s414 = scalar_lea.vmem [#allocation7], %s413
          %415 = dma.done %s411, 256
        $region52: #{_upsample_impl.1} parent=47 // pred_fallthru
          _
      $region48: #{_upsample_impl.1} parent=5 // pred_fallthru
        _
    $region6: #{_upsample_impl.1} parent=1 // loop_footer
      %s20 = sadd.s32 1, %s16
    $region7: #{_upsample_impl.1} parent=1 // loop_footer_branch
      %15 = sbr.rel target = $region3
    $region8: #{_upsample_impl.1} parent=1 // loop_exit
      _
    %416 = vsyncpa [#allocation3], 1
    %s417 = scalar_lea.sflag [#allocation3], 1
    %418 = vsyncpa %s417, 1
    %419 = vsyncpa [#allocation6], 1
    %420 = vsyncpa [#allocation4], 1
    %s421 = scalar_lea.sflag [#allocation4], 1
    %422 = vsyncpa %s421, 1

// kernel: _upsample_impl.1
$region0: #{_upsample_impl.1}
  #allocation0 [shape = 'u32[]', space=smem, size = 0x4, offset = 0x4, fixed_abs, tag = 'smem constant byte address 0x4 - core index']
  #allocation1 [shape = 'u32[144,128]{1,0:T(1,128)}', space=vmem, size = 0x12000, scoped, tag = 'internal scratch']
  %s0 = inlined_call_operand.hbm [shape: f32[2,8,32], index: 0, kind: input, shape index: {}]
  %s1 = inlined_call_operand.hbm [shape: f32[16,32], index: 1, kind: input, shape index: {}]
  %s2 = inlined_call_operand.vmem [shape: f32[1,32], index: 2, kind: input, shape index: {}]
  %s3 = inlined_call_operand.hbm [shape: f32[2,2,8,32], index: 3, kind: output, shape index: {}]
  %s4 = sld [smem:[#allocation0]]
  $region53: #{_upsample_impl.1} parent=0
    _
  %s6 = ssub.s32 1, %s4
  %s7 = scalar_select 0, %s6, %s4
  $region1: #{_upsample_impl.1} parent=0
    #allocation2 [shape = 'u8[8192]{0}', space=vmem, size = 0x2000, scoped, tag = 'input window, operand 0']
    #allocation3 [shape = 's32[2]{0}', space=sflag, size = 0x8, scoped, tag = 'scoped memory for _upsample_impl.1']
    #allocation4 [shape = 's32[2]{0}', space=sflag, size = 0x8, scoped, tag = 'scoped memory for _upsample_impl.1']
    #allocation5 [shape = 'u8[8192]{0}', space=vmem, size = 0x2000, scoped, tag = 'input window, operand 1, single buffered']
    #allocation6 [shape = 's32[1]{0}', space=sflag, size = 0x4, scoped, tag = 'scoped memory for _upsample_impl.1']
    #allocation7 [shape = 'u8[16384]{0}', space=vmem, size = 0x4000, scoped, tag = 'output window, operand 0']
    %8 = vsyncpa [#allocation3], 0
    %s9 = scalar_lea.sflag [#allocation3], 1
    %10 = vsyncpa %s9, 0
    %11 = vsyncpa [#allocation6], 0
    %12 = vsyncpa [#allocation4], 0
    %s13 = scalar_lea.sflag [#allocation4], 1
    %14 = vsyncpa %s13, 0
    loop: start=0, step=1, limit=4
    $region2: #{_upsample_impl.1} parent=1 // loop_pre_header
      _
    $region3: #{_upsample_impl.1} parent=1 // loop_header
      %s16 = sphi 0, %s20
      %p17 = scmp.ge.s32.totalorder %s16, 4
      %s23 = sphi 0, %s35
      %s24 = sphi 0, %s31
      %s25 = sphi 0, %s23
      %s26 = sphi 0, %s24
      %s27 = sphi 0, %s25
      %s28 = sphi 0, %s26
      %s40 = sphi 0, %s42
      %s43 = sphi 0, %s40
      %s44 = sphi 0, %s43
      %s60 = sphi 0, %s44
      %s64 = sphi 0, %s64
      %s66 = sphi 0, %s64
      %s67 = sphi 0, %s66
      %s81 = sphi 0, %s67
      %s85 = sphi 0, %s85
      %s87 = sphi 0, %s85
      %s88 = sphi 0, %s87
      %s102 = sphi 0, %s88
      %s110 = sphi 0, %s112
      %s113 = sphi 0, %s110
      %s114 = sphi 0, %s113
      %s130 = sphi 0, %s114
    $region4: #{_upsample_impl.1} parent=1 // loop_header_branch
      %19 = sbr.rel (%p17) target = $region8
    $region5: #{_upsample_impl.1} parent=1 // loop_body
      %s21 = ssub.s32 %s16, 1
      %s22 = ssub.s32 %s16, 2
      %s29 = sadd.s32 1, %s24
      %p30 = scmp.ge.s32.totalorder %s29, 1
      %s31 = scalar_select %p30, 0, %s29
      %s32 = sadd.s32 1, %s23
      %s33 = scalar_select %p30, %s32, %s23
      %p34 = scmp.ge.s32.totalorder %s33, 2
      %s35 = scalar_select %p34, 0, %s33
      %s36 = ssub.s32 %s23, %s35
      %s37 = ssub.s32 %s24, %s31
      %s38 = sor.u32 %s36, %s37
      %p39 = scmp.eq.s32.totalorder %s38, 0
      %s41 = sadd.s32 %s40, 1
      %s42 = scalar_select %p39, %s40, %s41
      %p45 = pneg %p39
      %p46 = scmp.eq.s32.totalorder %s16, 1
      %p47 = por %p45, %p46
      %p48 = scmp.ne.s32.totalorder %s40, %s43
      %p49 = scmp.eq.s32.totalorder %s16, 0
      %p50 = por %p48, %p49
      %p51 = scmp.ne.s32.totalorder %s40, %s43
      %p52 = scmp.eq.s32.totalorder %s21, 1
      %p53 = por %p51, %p52
      %p54 = scmp.ne.s32.totalorder %s43, %s44
      %p55 = scmp.eq.s32.totalorder %s21, 0
      %p56 = por %p54, %p55
      %p57 = scmp.ne.s32.totalorder %s43, %s44
      %p58 = scmp.eq.s32.totalorder %s22, 1
      %p59 = por %p57, %p58
      %p61 = scmp.ne.s32.totalorder %s44, %s60
      %p62 = scmp.eq.s32.totalorder %s22, 0
      %p63 = por %p61, %p62
      %s65 = sadd.s32 %s64, 1
      %p68 = scmp.eq.s32.totalorder %s16, 1
      %p69 = scmp.ne.s32.totalorder %s64, %s66
      %p70 = scmp.eq.s32.totalorder %s16, 0
      %p71 = por %p69, %p70
      %p72 = scmp.ne.s32.totalorder %s64, %s66
      %p73 = scmp.eq.s32.totalorder %s21, 1
      %p74 = por %p72, %p73
      %p75 = scmp.ne.s32.totalorder %s66, %s67
      %p76 = scmp.eq.s32.totalorder %s21, 0
      %p77 = por %p75, %p76
      %p78 = scmp.ne.s32.totalorder %s66, %s67
      %p79 = scmp.eq.s32.totalorder %s22, 1
      %p80 = por %p78, %p79
      %p82 = scmp.ne.s32.totalorder %s67, %s81
      %p83 = scmp.eq.s32.totalorder %s22, 0
      %p84 = por %p82, %p83
      %s86 = sadd.s32 %s85, 1
      %p89 = scmp.eq.s32.totalorder %s16, 1
      %p90 = scmp.ne.s32.totalorder %s85, %s87
      %p91 = scmp.eq.s32.totalorder %s16, 0
      %p92 = por %p90, %p91
      %p93 = scmp.ne.s32.totalorder %s85, %s87
      %p94 = scmp.eq.s32.totalorder %s21, 1
      %p95 = por %p93, %p94
      %p96 = scmp.ne.s32.totalorder %s87, %s88
      %p97 = scmp.eq.s32.totalorder %s21, 0
      %p98 = por %p96, %p97
      %p99 = scmp.ne.s32.totalorder %s87, %s88
      %p100 = scmp.eq.s32.totalorder %s22, 1
      %p101 = por %p99, %p100
      %p103 = scmp.ne.s32.totalorder %s88, %s102
      %p104 = scmp.eq.s32.totalorder %s22, 0
      %p105 = por %p103, %p104
      %s106 = ssub.s32 %s23, %s35
      %s107 = ssub.s32 %s24, %s31
      %s108 = sor.u32 %s106, %s107
      %p109 = scmp.eq.s32.totalorder %s108, 0
      %s111 = sadd.s32 %s110, 1
      %s112 = scalar_select %p109, %s110, %s111
      %p115 = pneg %p109
      %p116 = scmp.eq.s32.totalorder %s16, 1
      %p117 = por %p115, %p116
      %p118 = scmp.ne.s32.totalorder %s110, %s113
      %p119 = scmp.eq.s32.totalorder %s16, 0
      %p120 = por %p118, %p119
      %p121 = scmp.ne.s32.totalorder %s110, %s113
      %p122 = scmp.eq.s32.totalorder %s21, 1
      %p123 = por %p121, %p122
      %p124 = scmp.ne.s32.totalorder %s113, %s114
      %p125 = scmp.eq.s32.totalorder %s21, 0
      %p126 = por %p124, %p125
      %p127 = scmp.ne.s32.totalorder %s113, %s114
      %p128 = scmp.eq.s32.totalorder %s22, 1
      %p129 = por %p127, %p128
      %p131 = scmp.ne.s32.totalorder %s114, %s130
      %p132 = scmp.eq.s32.totalorder %s22, 0
      %p133 = por %p131, %p132
      %p134 = scmp.le.s32.totalorder 1, %s16
      %p135 = scmp.lt.s32.totalorder %s16, 3
      %p136 = pnand %p134, %p135
      %p137 = pneg %p136
      // Predicated region
      $region9: #{_upsample_impl.1} parent=5 // pred_check
        _
      $region10: #{_upsample_impl.1} parent=5 // pred_check_branch
        %139 = sbr.rel (%p136) target = $region12
      $region11: #{_upsample_impl.1} parent=5 // pred_region
        %s140 = ssub.s32 %s16, 1
        // Predicated region
        $region13: #{_upsample_impl.1} parent=11 // pred_check
          %p141 = pneg %p77
        $region14: #{_upsample_impl.1} parent=11 // pred_check_branch
          %143 = sbr.rel (%p141) target = $region16
        $region15: #{_upsample_impl.1} parent=11 // pred_region
          %s145 = ssub.s32 256, 256
          %146 = vsyncadd [#allocation6], %s145
          %s147 = sshll.u32 [#allocation5], 4
          %s148 = int_to_ptr.vmem [resolvable:$true] %s147
          %153 = dma.hbm_to_vmem [thread:$0]  %s1, 256, %s148, [#allocation6], 128, 128, 8
        $region16: #{_upsample_impl.1} parent=11 // pred_fallthru
          _
        // Predicated region
        $region17: #{_upsample_impl.1} parent=11 // pred_check
          %p154 = pneg %p98
        $region18: #{_upsample_impl.1} parent=11 // pred_check_branch
          %156 = sbr.rel (%p154) target = $region20
        $region19: #{_upsample_impl.1} parent=11 // pred_region
          _
        $region20: #{_upsample_impl.1} parent=11 // pred_fallthru
          _
      $region12: #{_upsample_impl.1} parent=5 // pred_fallthru
        _
      %p157 = scmp.lt.s32.totalorder %s16, 2
      // Predicated region
      $region21: #{_upsample_impl.1} parent=5 // pred_check
        %p158 = pneg %p157
      $region22: #{_upsample_impl.1} parent=5 // pred_check_branch
        %160 = sbr.rel (%p158) target = $region24
      $region23: #{_upsample_impl.1} parent=5 // pred_region
        // Predicated region
        $region25: #{_upsample_impl.1} parent=23 // pred_check
          %p161 = pneg %p50
        $region26: #{_upsample_impl.1} parent=23 // pred_check_branch
          %163 = sbr.rel (%p161) target = $region28
        $region27: #{_upsample_impl.1} parent=23 // pred_region
          %s164 = sand.u32 %s40, 1
          %s165 = scalar_lea.sflag [#allocation3], %s164
          %s166 = sand.u32 %s40, 1
          %s167 = smul.addr %s166, 8
          %s168 = scalar_lea.vmem [#allocation2], %s167
          %s170 = ssub.s32 128, 128
          %171 = vsyncadd %s165, %s170
          %s172 = sadd.s32 %s24, %s23
          %s173 = smul.addr %s172, 128
          %s174 = scalar_lea.hbm %s0, %s173
          %s176 = sshll.u32 %s168, 4
          %s177 = int_to_ptr.vmem [resolvable:$true] %s176
          %179 = dma.hbm_to_vmem [thread:$0]  %s174, 128, %s177, %s165
        $region28: #{_upsample_impl.1} parent=23 // pred_fallthru
          _
      $region24: #{_upsample_impl.1} parent=5 // pred_fallthru
        _
      %p180 = scmp.le.s32.totalorder 1, %s16
      %p181 = scmp.lt.s32.totalorder %s16, 3
      %p182 = pnand %p180, %p181
      %p183 = pneg %p182
      // Predicated region
      $region29: #{_upsample_impl.1} parent=5 // pred_check
        _
      $region30: #{_upsample_impl.1} parent=5 // pred_check_branch
        %185 = sbr.rel (%p182) target = $region32
      $region31: #{_upsample_impl.1} parent=5 // pred_region
        %s186 = ssub.s32 %s16, 1
        %s187 = sand.u32 %s43, 1
        %s188 = scalar_lea.sflag [#allocation3], %s187
        %s189 = sand.u32 %s43, 1
        %s190 = smul.addr %s189, 8
        %s191 = scalar_lea.vmem [#allocation2], %s190
        // Predicated region
        $region33: #{_upsample_impl.1} parent=31 // pred_check
          %p192 = pneg %p56
        $region34: #{_upsample_impl.1} parent=31 // pred_check_branch
          %194 = sbr.rel (%p192) target = $region36
        $region35: #{_upsample_impl.1} parent=31 // pred_region
          %195 = dma.done %s188, 128
        $region36: #{_upsample_impl.1} parent=31 // pred_fallthru
          _
        // Predicated region
        $region37: #{_upsample_impl.1} parent=31 // pred_check
          %p196 = pneg %p77
        $region38: #{_upsample_impl.1} parent=31 // pred_check_branch
          %198 = sbr.rel (%p196) target = $region40
        $region39: #{_upsample_impl.1} parent=31 // pred_region
          %199 = dma.done [#allocation6], 256
        $region40: #{_upsample_impl.1} parent=31 // pred_fallthru
          _
        %s200 = sand.u32 %s43, 1
        %s201 = scalar_lea.sflag [#allocation3], %s200
        %s202 = sand.u32 %s43, 1
        %s203 = smul.addr %s202, 8
        %s204 = scalar_lea.vmem [#allocation2], %s203
        %p205 = pneg %p56
        %p206 = pneg %p53
        %p207 = pneg %p77
        %p208 = pneg %p74
        %p209 = pneg %p98
        %p210 = pneg %p95
        %p211 = pneg %p126
        %p212 = pneg %p123
        %s213 = sand.u32 %s113, 1
        %s214 = scalar_lea.sflag [#allocation4], %s213
        %s215 = sand.u32 %s113, 1
        %s216 = smul.addr %s215, 16
        %s217 = scalar_lea.vmem [#allocation7], %s216
        %v218 = vld [vmem:[%s191] sm:$0xff]
        %v219 = vld [vmem:[#allocation5] sm:$0xff]
        %v220 = vld [vmem:[#allocation5 + $0x8] sm:$0xff]
        %v221 = vld [vmem:[%s2] sm:$0x1]
        %v223 = vlaneseq
        %v224 = vshrl.u32 %v223, 7
        %v225 = vsub.s32 0, %v224
        %v226 = vrot.slane %v221, %v225
        %vm228 = vcmask 130048
        %v230 = vsel %vm228, %v218, 0
        %232 = vmatprep.subr.mxu0 0.0
        %233 = vmatpush1.msra.mxu0 %v219
        %234 = vmatprep.subr.mxu0 0.0
        %235 = vmatpush1.msra.mxu0 %v220
        %236 = vmatprep.subr.mxu0 0.0
        %237 = vmatpush1.msra.mxu0 0.0
        %238 = vmatprep.subr.mxu0 0.0
        %239 = vmatpush1.msra.mxu0 0.0
        %240 = vmatprep.subr.mxu0 0.0
        %241 = vmatpush1.msra.mxu0 0.0
        %242 = vmatprep.subr.mxu0 0.0
        %243 = vmatpush1.msra.mxu0 0.0
        %244 = vmatprep.subr.mxu0 0.0
        %245 = vmatpush1.msra.mxu0 0.0
        %246 = vmatprep.subr.mxu0 0.0
        %247 = vmatpush1.msra.mxu0 0.0
        %248 = vmatprep.subr.mxu0 0.0
        %249 = vmatpush1.msra.mxu0 0.0
        %250 = vmatprep.subr.mxu0 0.0
        %251 = vmatpush1.msra.mxu0 0.0
        %252 = vmatprep.subr.mxu0 0.0
        %253 = vmatpush1.msra.mxu0 0.0
        %254 = vmatprep.subr.mxu0 0.0
        %255 = vmatpush1.msra.mxu0 0.0
        %256 = vmatprep.subr.mxu0 0.0
        %257 = vmatpush1.msra.mxu0 0.0
        %258 = vmatprep.subr.mxu0 0.0
        %259 = vmatpush1.msra.mxu0 0.0
        %260 = vmatprep.subr.mxu0 0.0
        %261 = vmatpush1.msra.mxu0 0.0
        %262 = vmatprep.subr.mxu0 0.0
        %263 = vmatpush1.msra.mxu0 0.0
        %264 = vmatprep.subr.mxu0 0.0
        %265 = vmatpush1.msra.mxu0 0.0
        %266 = vmatprep.subr.mxu0 0.0
        %267 = vmatpush1.msra.mxu0 0.0
        %268 = vmatprep.subr.mxu0 0.0
        %269 = vmatpush1.msra.mxu0 0.0
        %270 = vmatprep.subr.mxu0 0.0
        %271 = vmatpush1.msra.mxu0 0.0
        %272 = vmatprep.subr.mxu0 0.0
        %273 = vmatpush1.msra.mxu0 0.0
        %274 = vmatprep.subr.mxu0 0.0
        %275 = vmatpush1.msra.mxu0 0.0
        %276 = vmatprep.subr.mxu0 0.0
        %277 = vmatpush1.msra.mxu0 0.0
        %278 = vmatprep.subr.mxu0 0.0
        %279 = vmatpush1.msra.mxu0 0.0
        %280 = vmatprep.subr.mxu0 0.0
        %281 = vmatpush1.msra.mxu0 0.0
        %282 = vmatprep.subr.mxu0 0.0
        %283 = vmatpush1.msra.mxu0 0.0
        %284 = vmatprep.subr.mxu0 0.0
        %285 = vmatpush1.msra.mxu0 0.0
        %286 = vmatprep.subr.mxu0 0.0
        %287 = vmatpush1.msra.mxu0 0.0
        %288 = vmatprep.subr.mxu0 0.0
        %289 = vmatpush1.msra.mxu0 0.0
        %290 = vmatprep.subr.mxu0 0.0
        %291 = vmatpush1.msra.mxu0 0.0
        %292 = vmatprep.subr.mxu0 0.0
        %293 = vmatpush1.msra.mxu0 0.0
        %294 = vmatprep.subr.mxu0 0.0
        %295 = vmatpush1.msra.mxu0 0.0
        %296 = vmatprep.mubr.f32.mxu0 0.0
        %297 = vmatmul.mubr.f32.gmra.mrb[0].mxu0 %v230
        %v298 = vpop.f32.mrb[0].mxu0
        %v299 = vadd.f32 %v226, %v298
        %v300 = vpop.f32.mrb[0].mxu0
        %301 = vdwg.mxu0
        %vm302 = vcmask 261120
        %303 = vst.msk [vmem:[%s217] sm:$0xff] %vm302, %v299
        %304 = vrot.lane.b32.xlu0 %v218, 112
        %v305 = vpop.permute.xlu0 %304
        %v306 = vsel %vm228, %v305, 0
        %308 = vmatprep.subr.mxu0 0.0
        %309 = vmatpush1.msra.mxu0 %v219
        %310 = vmatprep.subr.mxu0 0.0
        %311 = vmatpush1.msra.mxu0 %v220
        %312 = vmatprep.subr.mxu0 0.0
        %313 = vmatpush1.msra.mxu0 0.0
        %314 = vmatprep.subr.mxu0 0.0
        %315 = vmatpush1.msra.mxu0 0.0
        %316 = vmatprep.subr.mxu0 0.0
        %317 = vmatpush1.msra.mxu0 0.0
        %318 = vmatprep.subr.mxu0 0.0
        %319 = vmatpush1.msra.mxu0 0.0
        %320 = vmatprep.subr.mxu0 0.0
        %321 = vmatpush1.msra.mxu0 0.0
        %322 = vmatprep.subr.mxu0 0.0
        %323 = vmatpush1.msra.mxu0 0.0
        %324 = vmatprep.subr.mxu0 0.0
        %325 = vmatpush1.msra.mxu0 0.0
        %326 = vmatprep.subr.mxu0 0.0
        %327 = vmatpush1.msra.mxu0 0.0
        %328 = vmatprep.subr.mxu0 0.0
        %329 = vmatpush1.msra.mxu0 0.0
        %330 = vmatprep.subr.mxu0 0.0
        %331 = vmatpush1.msra.mxu0 0.0
        %332 = vmatprep.subr.mxu0 0.0
        %333 = vmatpush1.msra.mxu0 0.0
        %334 = vmatprep.subr.mxu0 0.0
        %335 = vmatpush1.msra.mxu0 0.0
        %336 = vmatprep.subr.mxu0 0.0
        %337 = vmatpush1.msra.mxu0 0.0
        %338 = vmatprep.subr.mxu0 0.0
        %339 = vmatpush1.msra.mxu0 0.0
        %340 = vmatprep.subr.mxu0 0.0
        %341 = vmatpush1.msra.mxu0 0.0
        %342 = vmatprep.subr.mxu0 0.0
        %343 = vmatpush1.msra.mxu0 0.0
        %344 = vmatprep.subr.mxu0 0.0
        %345 = vmatpush1.msra.mxu0 0.0
        %346 = vmatprep.subr.mxu0 0.0
        %347 = vmatpush1.msra.mxu0 0.0
        %348 = vmatprep.subr.mxu0 0.0
        %349 = vmatpush1.msra.mxu0 0.0
        %350 = vmatprep.subr.mxu0 0.0
        %351 = vmatpush1.msra.mxu0 0.0
        %352 = vmatprep.subr.mxu0 0.0
        %353 = vmatpush1.msra.mxu0 0.0
        %354 = vmatprep.subr.mxu0 0.0
        %355 = vmatpush1.msra.mxu0 0.0
        %356 = vmatprep.subr.mxu0 0.0
        %357 = vmatpush1.msra.mxu0 0.0
        %358 = vmatprep.subr.mxu0 0.0
        %359 = vmatpush1.msra.mxu0 0.0
        %360 = vmatprep.subr.mxu0 0.0
        %361 = vmatpush1.msra.mxu0 0.0
        %362 = vmatprep.subr.mxu0 0.0
        %363 = vmatpush1.msra.mxu0 0.0
        %364 = vmatprep.subr.mxu0 0.0
        %365 = vmatpush1.msra.mxu0 0.0
        %366 = vmatprep.subr.mxu0 0.0
        %367 = vmatpush1.msra.mxu0 0.0
        %368 = vmatprep.subr.mxu0 0.0
        %369 = vmatpush1.msra.mxu0 0.0
        %370 = vmatprep.subr.mxu0 0.0
        %371 = vmatpush1.msra.mxu0 0.0
        %372 = vmatprep.mubr.f32.mxu0 0.0
        %373 = vmatmul.mubr.f32.gmra.mrb[0].mxu0 %v306
        %v374 = vpop.f32.mrb[0].mxu0
        %v375 = vadd.f32 %v226, %v374
        %v376 = vpop.f32.mrb[0].mxu0
        %377 = vdwg.mxu0
        %s378 = scalar_lea.vmem %s217, 8 [#allocation7]
        %379 = vst.msk [vmem:[%s378] sm:$0xff] %vm302, %v375
        %s380 = sand.u32 %s113, 1
        %s381 = scalar_lea.sflag [#allocation4], %s380
        %s382 = sand.u32 %s113, 1
        %s383 = smul.addr %s382, 16
        %s384 = scalar_lea.vmem [#allocation7], %s383
        // Predicated region
        $region41: #{_upsample_impl.1} parent=31 // pred_check
          %p385 = pneg %p123
        $region42: #{_upsample_impl.1} parent=31 // pred_check_branch
          %387 = sbr.rel (%p385) target = $region44
        $region43: #{_upsample_impl.1} parent=31 // pred_region
          %s389 = ssub.s32 256, 256
          %390 = vsyncadd %s381, %s389
          %s391 = smul.addr %s25, 2
          %s392 = sadd.s32 %s26, %s391
          %s393 = smul.addr %s392, 128
          %s394 = scalar_lea.hbm %s3, %s393
          %s395 = sshll.u32 %s384, 4
          %s396 = int_to_ptr.vmem [resolvable:$true] %s395
          %401 = dma.vmem_to_hbm [thread:$0]  %s396, 256, %s394, %s381, 128, 128, 8
        $region44: #{_upsample_impl.1} parent=31 // pred_fallthru
          _
      $region32: #{_upsample_impl.1} parent=5 // pred_fallthru
        _
      %p402 = scmp.le.s32.totalorder 2, %s16
      // Predicated region
      $region45: #{_upsample_impl.1} parent=5 // pred_check
        %p403 = pneg %p402
      $region46: #{_upsample_impl.1} parent=5 // pred_check_branch
        %405 = sbr.rel (%p403) target = $region48
      $region47: #{_upsample_impl.1} parent=5 // pred_region
        %s406 = ssub.s32 %s16, 2
        // Predicated region
        $region49: #{_upsample_impl.1} parent=47 // pred_check
          %p407 = pneg %p129
        $region50: #{_upsample_impl.1} parent=47 // pred_check_branch
          %409 = sbr.rel (%p407) target = $region52
        $region51: #{_upsample_impl.1} parent=47 // pred_region
          %s410 = sand.u32 %s114, 1
          %s411 = scalar_lea.sflag [#allocation4], %s410
          %s412 = sand.u32 %s114, 1
          %s413 = smul.addr %s412, 16
          %s414 = scalar_lea.vmem [#allocation7], %s413
          %415 = dma.done %s411, 256
        $region52: #{_upsample_impl.1} parent=47 // pred_fallthru
          _
      $region48: #{_upsample_impl.1} parent=5 // pred_fallthru
        _
    $region6: #{_upsample_impl.1} parent=1 // loop_footer
      %s20 = sadd.s32 1, %s16
    $region7: #{_upsample_impl.1} parent=1 // loop_footer_branch
      %15 = sbr.rel target = $region3
    $region8: #{_upsample_impl.1} parent=1 // loop_exit
      _
    %416 = vsyncpa [#allocation3], 1
    %s417 = scalar_lea.sflag [#allocation3], 1
    %418 = vsyncpa %s417, 1
    %419 = vsyncpa [#allocation6], 1
    %420 = vsyncpa [#allocation4], 1
    %s421 = scalar_lea.sflag [#allocation4], 1
    %422 = vsyncpa %s421, 1

</llo_original>
